<compile_context>
chip_gen: v5e
topology: v5e:2x2
jax: 0.10.0
libtpu: 0.0.40
codegen_flags: <defaults>
</compile_context>

<pallas_src>
import math
from functools import partial

import numpy as np
import jax
import jax.numpy as jnp
from jax.experimental import pallas as pl
from jax.experimental.pallas import tpu as pltpu


# ----------------------------------------------------------------------------
# Parameter-only glue: build the interpolation / conv folding matrices.
# ----------------------------------------------------------------------------
def _interp_matrix(offset, n_drift, n_pred, L):
    """G[i, m, j] such that deform[:, i, j] = sum_m x[:, i, m] * G[i, m, j]."""
    j = jnp.arange(n_pred, dtype=jnp.float32)[None, :]
    pos = jnp.tanh(offset) * float(n_drift) + (j + float(n_drift))   # (C, P)
    key = jnp.floor(pos).astype(jnp.int32)   # int() truncation == floor (pos >= 0)
    frac = pos - key.astype(jnp.float32)
    m = jnp.arange(L, dtype=jnp.int32)[None, :, None]                # (1, L, 1)
    key_e = key[:, None, :]                                          # (C, 1, P)
    frac_e = frac[:, None, :]
    G = ((m == key_e).astype(jnp.float32) * (1.0 - frac_e)
         + (m == (key_e + 1)).astype(jnp.float32) * frac_e)          # (C, L, P)
    return G


def _conv_t_matrix(w_t, n_pred):
    """Ct[i, l, j] = conv1d(k=3, pad=1) weight applied at input pos l, out pos j."""
    l = jnp.arange(n_pred)[:, None]
    j = jnp.arange(n_pred)[None, :]
    k = l - j + 1
    valid = ((k >= 0) & (k <= 2)).astype(jnp.float32)
    kc = jnp.clip(k, 0, 2)
    return w_t[0][:, kc] * valid[None]          # (C, P, P)


# ----------------------------------------------------------------------------
# Pallas kernel: one fused GEMM + per-node bias + sigmoid gate + blend.
# ----------------------------------------------------------------------------
def _fused_kernel(xa_ref, fw_ref, b_ref, out_ref, *, n_pred, reps):
    P = n_pred
    # (block_m, K_aug) @ (K_aug, 3P) -> [pred_t | pred_n | ctrl @ W], f32 acc.
    r = jnp.dot(xa_ref[...], fw_ref[...], preferred_element_type=jnp.float32)
    pred_t = r[:, 0 * P:1 * P]          # conv1d_t output (bias already folded)
    pred_n = r[:, 1 * P:2 * P]          # conv1d_n output (bias already folded)
    # Per-node bias: b is (n_nodes, P) resident in VMEM; node index repeats
    # every n_nodes rows, and block_m is a multiple of n_nodes by construction.
    act = r[:, 2 * P:3 * P] + jnp.tile(b_ref[...], (reps, 1))
    gate = jax.nn.sigmoid(act)
    out_ref[...] = (pred_n * gate + pred_t * (1.0 - gate)).astype(out_ref.dtype)


def _round_up(x, m):
    return ((x + m - 1) // m) * m


# ----------------------------------------------------------------------------
# Wrapper
# ----------------------------------------------------------------------------
def deformable_conv_standard(inp, ctrl, params, *, n_pred, n_drift, n_d_w,
                             max_block_m=2048, compute_dtype=jnp.bfloat16):
    b, n, c, L = inp.shape
    assert c == n_d_w and L == n_pred + 2 * n_drift
    BN = b * n
    K = n_d_w * L
    P = n_pred
    K_aug = K + P + 1                       # [x | ctrl | 1]

    # ---- fold deformation + convs into dense matrices (parameter-only) ----
    G_t = _interp_matrix(params["offset_t"], n_drift, n_pred, L)     # (C, L, P)
    Ct = _conv_t_matrix(params["w_t"], n_pred)                       # (C, P, P)
    A_t = jnp.einsum("iml,ilj->imj", G_t, Ct).reshape(K, P)

    G_n = _interp_matrix(params["offset_n"], n_drift, n_pred, L)     # (C, L, P)
    A_n = jnp.einsum("kmc,ock->kmo", G_n, params["w_n"]).reshape(K, P)

    W = params["W"].astype(jnp.float32)
    bias_t = params["bias_t"].astype(jnp.float32).reshape(1)
    bias_n = params["bias_n"].astype(jnp.float32).reshape(P)

    # ---- fused block-diagonal weight (K_aug, 3P) ---------------------------
    fused_w = jnp.zeros((K_aug, 3 * P), jnp.float32)
    fused_w = fused_w.at[:K, 0:P].set(A_t)
    fused_w = fused_w.at[:K, P:2 * P].set(A_n)
    fused_w = fused_w.at[K:K + P, 2 * P:3 * P].set(W)
    fused_w = fused_w.at[K + P, 0:P].set(bias_t[0])          # conv1d_t bias
    fused_w = fused_w.at[K + P, P:2 * P].set(bias_n)         # conv1d_n bias
    fused_w = fused_w.astype(compute_dtype)

    # ---- augmented activations  [x | ctrl | 1] -----------------------------
    x_flat = inp.reshape(BN, K).astype(jnp.float32)
    ctrl_flat = ctrl.reshape(BN, P).astype(jnp.float32)
    ones = jnp.ones((BN, 1), jnp.float32)
    x_aug = jnp.concatenate([x_flat, ctrl_flat, ones], axis=1).astype(compute_dtype)

    b_node = params["b"].astype(jnp.float32)                  # (n_nodes, P)
    n_nodes = b_node.shape[0]
    assert n == n_nodes

    # ---- row-tile selection (multiple of 8 sublanes and of n_nodes) --------
    unit = math.lcm(8, n_nodes)
    cap = max(unit, (max_block_m // unit) * unit)
    block_m = min(_round_up(BN, unit), cap)
    # For big problems keep >= 2 grid steps so the 'parallel' axis can shard
    # across both TensorCores on 2-TC parts.
    if BN > 1024 and _round_up(BN, block_m) // block_m < 2:
        block_m = max(unit, ((block_m // 2) // unit) * unit)
    BN_pad = _round_up(BN, block_m)
    if BN_pad != BN:
        x_aug = jnp.pad(x_aug, ((0, BN_pad - BN), (0, 0)))
    grid_m = BN_pad // block_m
    reps = block_m // n_nodes

    kernel = partial(_fused_kernel, n_pred=P, reps=reps)

    out = pl.pallas_call(
        kernel,
        out_shape=jax.ShapeDtypeStruct((BN_pad, P), jnp.float32),
        grid_spec=pltpu.PrefetchScalarGridSpec(
            num_scalar_prefetch=0,
            grid=(grid_m,),
            in_specs=[
                pl.BlockSpec((block_m, K_aug), lambda i: (i, 0)),   # [x|ctrl|1]
                pl.BlockSpec((K_aug, 3 * P), lambda i: (0, 0)),     # fused W
                pl.BlockSpec((n_nodes, P), lambda i: (0, 0)),       # per-node b
            ],
            out_specs=pl.BlockSpec((block_m, P), lambda i: (i, 0)),
        ),
        compiler_params=pltpu.CompilerParams(
            dimension_semantics=("parallel",)),
    )(x_aug, fused_w, b_node)

    return out[:BN].reshape(b, n, P)


# ----------------------------------------------------------------------------
# Pure numpy reference (direct interpolation + explicit convs) for validation.
# ----------------------------------------------------------------------------
def reference_forward(inp, ctrl, params, *, n_pred, n_drift, n_d_w):
    inp = np.asarray(inp, np.float64)
    ctrl = np.asarray(ctrl, np.float64)
    p = {k: np.asarray(v, np.float64) for k, v in params.items()}
    b, n, c, L = inp.shape
    BN = b * n
    x = inp.reshape(BN, c, L)

    def deform(offset):
        pos = np.tanh(offset) * n_drift + (np.arange(n_pred)[None, :] + n_drift)
        key = np.floor(pos).astype(np.int64)
        frac = pos - key
        out = np.zeros((BN, c, n_pred))
        for i in range(c):
            for j in range(n_pred):
                k = key[i, j]
                out[:, i, j] = (x[:, i, k] * (1.0 - frac[i, j])
                                + x[:, i, k + 1] * frac[i, j])
        return out

    d_t = deform(p["offset_t"])
    d_n = deform(p["offset_n"])

    # conv1d_t: in_ch=c, out_ch=1, k=3, pad=1
    xt = np.pad(d_t, ((0, 0), (0, 0), (1, 1)))
    pred_t = np.zeros((BN, n_pred))
    for j in range(n_pred):
        pred_t[:, j] = np.einsum("bik,ik->b", xt[:, :, j:j + 3], p["w_t"][0]) \
                       + p["bias_t"][0]

    # conv1d_n: input is permuted deform_n, in_ch=n_pred, k=c -> out length 1
    xn = d_n.transpose(0, 2, 1)                                    # (BN, P, c)
    pred_n = np.einsum("bck,ock->bo", xn, p["w_n"]) + p["bias_n"][None, :]

    act = ctrl.reshape(BN, n_pred) @ p["W"] + np.tile(p["b"], (b, 1))
    gate = 1.0 / (1.0 + np.exp(-act))
    out = pred_n * gate + pred_t * (1.0 - gate)
    return out.reshape(b, n, n_pred)


# ----------------------------------------------------------------------------
if __name__ == "__main__":
    # Module hyper-params (small, consistent with the forward pass)
    n_pred, n_drift, n_d_w, n_nodes = 8, 2, 4, 8
    B = 2
    L = n_pred + 2 * n_drift            # 12

    key = jax.random.PRNGKey(0)
    ks = jax.random.split(key, 8)

    params = {
        # conv1d_t: Conv1d(n_d_w, 1, kernel_size=3)
        "w_t": 0.1 * jax.random.normal(ks[0], (1, n_d_w, 3), jnp.float32),
        "bias_t": 0.1 * jax.random.normal(ks[1], (1,), jnp.float32),
        # conv1d_n: Conv1d(n_pred, n_pred, kernel_size=n_d_w)
        "w_n": 0.1 * jax.random.normal(ks[2], (n_pred, n_pred, n_d_w), jnp.float32),
        "bias_n": 0.1 * jax.random.normal(ks[3], (n_pred,), jnp.float32),
        # offsets: zeros, per module __init__
        "offset_t": jnp.zeros((n_d_w, n_pred), jnp.float32),
        "offset_n": jnp.zeros((n_d_w, n_pred), jnp.float32),
        # W, b: normal init per module __init__
        "W": jax.random.normal(ks[4], (n_pred, n_pred), jnp.float32),
        "b": jax.random.normal(ks[5], (n_nodes, n_pred), jnp.float32),
    }

    inp = jax.random.normal(ks[6], (B, n_nodes, n_d_w, L), jnp.float32)
    ctrl = jax.random.normal(ks[7], (B, n_nodes, n_pred), jnp.float32)

    ref = reference_forward(inp, ctrl, params,
                            n_pred=n_pred, n_drift=n_drift, n_d_w=n_d_w)

    # f32 compute path: tight correctness check of the fused-GEMM kernel.
    out_f32 = deformable_conv_standard(inp, ctrl, params,
                                       n_pred=n_pred, n_drift=n_drift,
                                       n_d_w=n_d_w,
                                       compute_dtype=jnp.float32)
    out_f32 = jax.block_until_ready(out_f32)
    np.testing.assert_allclose(np.asarray(out_f32), ref, rtol=1e-3, atol=1e-4)

    # Default bf16-stream path (memory-roofline optimization): sanity check
    # with a tolerance appropriate for bf16 inputs (f32 accumulation).
    out_bf16 = deformable_conv_standard(inp, ctrl, params,
                                        n_pred=n_pred, n_drift=n_drift,
                                        n_d_w=n_d_w)
    out_bf16 = jax.block_until_ready(out_bf16)
    np.testing.assert_allclose(np.asarray(out_bf16), ref, rtol=2e-2, atol=1e-1)

    print("KERNEL_OK")
</pallas_src>

<mosaic_0001>
module attributes {stable_mosaic.version = 11 : i64} {
  func.func @_fused_kernel(%arg0: i32, %arg1: memref<16x57xf32, #tpu.memory_space<vmem>>, %arg2: memref<57x24xf32, #tpu.memory_space<vmem>>, %arg3: memref<8x8xf32, #tpu.memory_space<vmem>>, %arg4: memref<16x8xf32, #tpu.memory_space<vmem>>) attributes {dimension_semantics = [#tpu.dimension_semantics<parallel>], iteration_bounds = array<i64: 1>, scalar_prefetch = 0 : i64, scratch_operands = 0 : i64, tpu.core_type = #tpu.core_type<tc>, window_params = [{transform_indices = @transform_0, window_bounds = array<i64: 16, 57>}, {pipeline_mode = #tpu.pipeline_mode<synchronous>, transform_indices = @transform_1, window_bounds = array<i64: 57, 24>}, {pipeline_mode = #tpu.pipeline_mode<synchronous>, transform_indices = @transform_2, window_bounds = array<i64: 8, 8>}, {transform_indices = @transform_3, window_bounds = array<i64: 16, 8>}]} {
    %c0 = arith.constant 0 : index
    %c0_0 = arith.constant 0 : index
    %0 = vector.load %arg1[%c0, %c0_0] : memref<16x57xf32, #tpu.memory_space<vmem>>, vector<16x57xf32>
    %c0_1 = arith.constant 0 : index
    %c0_2 = arith.constant 0 : index
    %1 = vector.load %arg2[%c0_1, %c0_2] : memref<57x24xf32, #tpu.memory_space<vmem>>, vector<57x24xf32>
    %cst = arith.constant dense<0.000000e+00> : vector<16x24xf32>
    %2 = tpu.matmul %0, %1, %cst {dimension_numbers = #tpu.dot_dimension_numbers<[1], [0], [0], [1], [0, 0, 1, 1], [], []>} : vector<16x57xf32>, vector<57x24xf32>, vector<16x24xf32> -> vector<16x24xf32>
    %3 = vector.extract_strided_slice %2 {offsets = [0, 0], sizes = [16, 8], strides = [1, 1]} : vector<16x24xf32> to vector<16x8xf32>
    %4 = vector.extract_strided_slice %2 {offsets = [0, 8], sizes = [16, 8], strides = [1, 1]} : vector<16x24xf32> to vector<16x8xf32>
    %5 = vector.extract_strided_slice %2 {offsets = [0, 16], sizes = [16, 8], strides = [1, 1]} : vector<16x24xf32> to vector<16x8xf32>
    %c0_3 = arith.constant 0 : index
    %c0_4 = arith.constant 0 : index
    %6 = vector.load %arg3[%c0_3, %c0_4] : memref<8x8xf32, #tpu.memory_space<vmem>>, vector<8x8xf32>
    %7 = tpu.concatenate %6, %6 in 0 : vector<8x8xf32>, vector<8x8xf32> -> vector<16x8xf32>
    %8 = arith.addf %5, %7 : vector<16x8xf32>
    %9 = arith.negf %8 : vector<16x8xf32>
    %10 = math.exp %9 : vector<16x8xf32>
    %cst_5 = arith.constant 1.000000e+00 : f32
    %11 = vector.broadcast %cst_5 : f32 to vector<16x8xf32>
    %12 = arith.addf %11, %10 : vector<16x8xf32>
    %13 = arith.divf %11, %12 : vector<16x8xf32>
    %14 = arith.mulf %4, %13 : vector<16x8xf32>
    %cst_6 = arith.constant 1.000000e+00 : f32
    %15 = vector.broadcast %cst_6 : f32 to vector<16x8xf32>
    %16 = arith.subf %15, %13 : vector<16x8xf32>
    %17 = arith.mulf %3, %16 : vector<16x8xf32>
    %18 = arith.addf %14, %17 : vector<16x8xf32>
    %c0_7 = arith.constant 0 : index
    %c0_8 = arith.constant 0 : index
    %19 = vector.load %arg4[%c0_7, %c0_8] : memref<16x8xf32, #tpu.memory_space<vmem>>, vector<16x8xf32>
    tpu.vector_store %arg4[%c0_7, %c0_8], %18 {strides = array<i32>} : memref<16x8xf32, #tpu.memory_space<vmem>>, vector<16x8xf32>,
    return
  }
  func.func @transform_0(%arg0: i32) -> (i32, i32) {
    %c0_i32 = arith.constant 0 : i32
    %c0_i32_0 = arith.constant 0 : i32
    return %arg0, %c0_i32 : i32, i32
  }
  func.func @transform_1(%arg0: i32) -> (i32, i32) {
    %c0_i32 = arith.constant 0 : i32
    %c0_i32_0 = arith.constant 0 : i32
    %c0_i32_1 = arith.constant 0 : i32
    return %c0_i32, %c0_i32_0 : i32, i32
  }
  func.func @transform_2(%arg0: i32) -> (i32, i32) {
    %c0_i32 = arith.constant 0 : i32
    %c0_i32_0 = arith.constant 0 : i32
    %c0_i32_1 = arith.constant 0 : i32
    return %c0_i32, %c0_i32_0 : i32, i32
  }
  func.func @transform_3(%arg0: i32) -> (i32, i32) {
    %c0_i32 = arith.constant 0 : i32
    %c0_i32_0 = arith.constant 0 : i32
    return %arg0, %c0_i32 : i32, i32
  }
}

</mosaic_0001>

<llo_original>
// kernel: tpu_custom_call.1
$region0: #{tpu_custom_call.1}
  #allocation0 [shape = 'u32[]', space=smem, size = 0x4, offset = 0x4, fixed_abs, tag = 'smem constant byte address 0x4 - core index']
  #allocation1 [shape = 'u32[72,128]{1,0:T(1,128)}', space=vmem, size = 0x9000, scoped, tag = 'internal scratch']
  %s0 = inlined_call_operand.vmem [shape: f32[16,57], index: 0, kind: input, shape index: {}]
  %s1 = inlined_call_operand.vmem [shape: f32[57,24], index: 1, kind: input, shape index: {}]
  %s2 = inlined_call_operand.vmem [shape: f32[8,8], index: 2, kind: input, shape index: {}]
  %s3 = inlined_call_operand.vmem [shape: f32[16,8], index: 3, kind: output, shape index: {}]
  %s4 = sld [smem:[#allocation0]]
  $region22: #{tpu_custom_call.1} parent=0
    _
  %s6 = ssub.s32 1, %s4
  %s7 = scalar_select 0, %s6, %s4
  // Predicated region
  $region2: #{tpu_custom_call.1} parent=0 // pred_check
    _
  $region3: #{tpu_custom_call.1} parent=0 // pred_check_branch
    %9 = sbr.rel (0) target = $region5
  $region4: #{tpu_custom_call.1} parent=0 // pred_region
    _
  $region5: #{tpu_custom_call.1} parent=0 // pred_fallthru
    _
  // Predicated region
  $region6: #{tpu_custom_call.1} parent=0 // pred_check
    _
  $region7: #{tpu_custom_call.1} parent=0 // pred_check_branch
    %11 = sbr.rel (0) target = $region9
  $region8: #{tpu_custom_call.1} parent=0 // pred_region
    _
  $region9: #{tpu_custom_call.1} parent=0 // pred_fallthru
    _
  // Predicated region
  $region10: #{tpu_custom_call.1} parent=0 // pred_check
    _
  $region11: #{tpu_custom_call.1} parent=0 // pred_check_branch
    %13 = sbr.rel (0) target = $region13
  $region12: #{tpu_custom_call.1} parent=0 // pred_region
    _
  $region13: #{tpu_custom_call.1} parent=0 // pred_fallthru
    _
  %v14 = vld [vmem:[%s0] sm:$0xff]
  %v15 = vld [vmem:[%s0 + $0x8] sm:$0xff]
  %v16 = vld [vmem:[%s1] sm:$0xff]
  %v17 = vld [vmem:[%s1 + $0x8] sm:$0xff]
  %v18 = vld [vmem:[%s1 + $0x10] sm:$0xff]
  %v19 = vld [vmem:[%s1 + $0x18] sm:$0xff]
  %v20 = vld [vmem:[%s1 + $0x20] sm:$0xff]
  %v21 = vld [vmem:[%s1 + $0x28] sm:$0xff]
  %v22 = vld [vmem:[%s1 + $0x30] sm:$0xff]
  %v23 = vld [vmem:[%s1 + $0x38] sm:$0x1]
  %vm24 = vcmask 465920
  %v26 = vsel %vm24, %v14, 0
  %v29 = vsel %vm24, %v15, 0
  %vm31 = vcmask 1040384
  %v33 = vsel %vm31, %v23, 0
  %35 = vmatpush.msra.mxu0 0.0
  %36 = vmatpush.msra.mxu0 0.0
  %37 = vmatpush.msra.mxu0 0.0
  %38 = vmatpush.msra.mxu0 0.0
  %39 = vmatpush.msra.mxu0 0.0
  %40 = vmatpush.msra.mxu0 0.0
  %41 = vmatpush.msra.mxu0 0.0
  %42 = vmatpush.msra.mxu0 0.0
  %43 = vmatpush.msra.mxu0 %v33
  %44 = vmatpush.msra.mxu0 %v22
  %45 = vmatpush.msra.mxu0 %v21
  %46 = vmatpush.msra.mxu0 %v20
  %47 = vmatpush.msra.mxu0 %v19
  %48 = vmatpush.msra.mxu0 %v18
  %49 = vmatpush.msra.mxu0 %v17
  %50 = vmatpush.msra.mxu0 %v16
  %51 = vmatmul.f32.gmra.mxu0 %v26
  %v52 = vpop.f32.mrf.mxu0
  %v53 = vadd.f32 0.0, %v52
  %54 = vmatmul.f32.gmra.mxu0 %v29
  %v55 = vpop.f32.mrf.mxu0
  %v56 = vadd.f32 0.0, %v55
  %57 = vdwg.mxu0
  %v58 = vld [vmem:[%s2] sm:$0xff]
  %60 = vrot.lane.b32.xlu0 %v58, 16
  %v61 = vpop.permute.xlu0 %60
  %v63 = vadd.f32 %v53, %v61
  %v64 = vadd.f32 %v56, %v61
  %v65 = vxor.u32 %v63, 2147483648
  %v66 = vxor.u32 %v64, 2147483648
  %v67 = vmul.f32 %v65, 1.442695
  %v68 = vpow.pop %v67
  %v69 = vmul.f32 %v66, 1.442695
  %v70 = vpow.pop %v69
  %v71 = vadd.f32 %v68, 1.0
  %v72 = vadd.f32 %v70, 1.0
  %v73 = vrcp.pop %v71
  %v74 = vmul.f32 %v71, %v73
  %v75 = vsub.f32 1.0, %v74
  %v76 = vmul.f32 %v73, %v75
  %v77 = vadd.f32 %v73, %v76
  %vm78 = vweird.f32 %v71
  %vm79 = vweird.f32 %v73
  %vm80 = vmor %vm78, %vm79
  %v81 = vsel %vm80, %v73, %v77
  %v82 = vand.u32 2147483647, %v71
  %vm83 = vcmp.eq.f32.partialorder %v82, 8.507059e+37
  %v84 = vand.u32 %v71, 2147483648
  %v85 = vor.u32 1.1754944e-38, %v84
  %v86 = vsel %vm83, %v85, %v81
  %v87 = vmul.f32 1.0, %v86
  %v88 = vrcp.pop %v72
  %v89 = vmul.f32 %v72, %v88
  %v90 = vsub.f32 1.0, %v89
  %v91 = vmul.f32 %v88, %v90
  %v92 = vadd.f32 %v88, %v91
  %vm93 = vweird.f32 %v72
  %vm94 = vweird.f32 %v88
  %vm95 = vmor %vm93, %vm94
  %v96 = vsel %vm95, %v88, %v92
  %v97 = vand.u32 2147483647, %v72
  %vm98 = vcmp.eq.f32.partialorder %v97, 8.507059e+37
  %v99 = vand.u32 %v72, 2147483648
  %v100 = vor.u32 1.1754944e-38, %v99
  %v101 = vsel %vm98, %v100, %v96
  %v102 = vmul.f32 1.0, %v101
  %105 = vrot.lane.b32.xlu0 %v87, 120
  %v106 = vpop.permute.xlu0 %105
  %107 = vrot.lane.b32.xlu0 %v102, 120
  %v108 = vpop.permute.xlu0 %107
  %v111 = vmul.f32 %v53, %v106
  %v112 = vmul.f32 %v56, %v108
  %v113 = vsub.f32 1.0, %v87
  %v114 = vsub.f32 1.0, %v102
  %117 = vrot.lane.b32.xlu0 %v113, 112
  %v118 = vpop.permute.xlu0 %117
  %119 = vrot.lane.b32.xlu0 %v114, 112
  %v120 = vpop.permute.xlu0 %119
  %v123 = vmul.f32 %v53, %v118
  %v124 = vmul.f32 %v56, %v120
  %127 = vrot.lane.b32.xlu0 %v123, 8
  %v128 = vpop.permute.xlu0 %127
  %129 = vrot.lane.b32.xlu0 %v124, 8
  %v130 = vpop.permute.xlu0 %129
  %v133 = vadd.f32 %v111, %v128
  %v134 = vadd.f32 %v112, %v130
  %137 = vrot.lane.b32.xlu0 %v133, 120
  %v138 = vpop.permute.xlu0 %137
  %139 = vrot.lane.b32.xlu0 %v134, 120
  %v140 = vpop.permute.xlu0 %139
  %vm143 = vcmask 64512
  %144 = vst.msk [vmem:[%s3] sm:$0xff] %vm143, %v138
  %145 = vst.msk [vmem:[%s3 + $0x8] sm:$0xff] %vm143, %v140
  // Predicated region
  $region14: #{tpu_custom_call.1} parent=0 // pred_check
    _
  $region15: #{tpu_custom_call.1} parent=0 // pred_check_branch
    %147 = sbr.rel (0) target = $region17
  $region16: #{tpu_custom_call.1} parent=0 // pred_region
    _
  $region17: #{tpu_custom_call.1} parent=0 // pred_fallthru
    _
  // Predicated region
  $region18: #{tpu_custom_call.1} parent=0 // pred_check
    _
  $region19: #{tpu_custom_call.1} parent=0 // pred_check_branch
    %149 = sbr.rel (0) target = $region21
  $region20: #{tpu_custom_call.1} parent=0 // pred_region
    _
  $region21: #{tpu_custom_call.1} parent=0 // pred_fallthru
    _

</llo_original>
